<compile_context>
chip_gen: v5e
topology: v5e:2x2
jax: 0.10.0
libtpu: 0.0.40
codegen_flags: <defaults>
</compile_context>

<pallas_src>
import functools

import numpy as np
import jax
import jax.numpy as jnp
from jax.experimental import pallas as pl
from jax.experimental.pallas import tpu as pltpu

# ----------------------------- module configuration -----------------------------
IMAGE_SIZE = 32      # config.image_size
PERIODICITY = 8      # config.periodicity
CH_EPS = 1e-8        # normalize_minmax eps
OUT_EPS = 1e-6       # final self.normalize eps
# config.interpolation only affects self.input_resize (PIL Resize), which is unused
# in forward(); the seg path always uses F.interpolate(mode='bilinear').


# ----------------------------- host-side constants ------------------------------
def _bilinear_resize_matrix(in_size, out_size):
    """1-D interpolation matrix matching F.interpolate(mode='bilinear',
    align_corners=False) along one axis.  Shape (out_size, in_size)."""
    mat = np.zeros((out_size, in_size), dtype=np.float32)
    scale = in_size / out_size
    for i in range(out_size):
        src = (i + 0.5) * scale - 0.5
        if src < 0.0:
            src = 0.0
        i0 = min(int(np.floor(src)), in_size - 1)
        i1 = min(i0 + 1, in_size - 1)
        frac = src - i0
        mat[i, i0] += 1.0 - frac
        mat[i, i1] += frac
    return mat


def _vmem_limit_bytes():
    """Chip-adaptive scoped-VMEM limit: ~half of physical VMEM (64 MiB on 128 MiB
    v5e/v6e parts, 32 MiB on v7x's 64 MiB parts). Safe 32 MiB fallback."""
    try:
        cap = int(pltpu.get_tpu_info().vmem_capacity_bytes)
    except Exception:
        return 32 * 1024 * 1024
    return int(min(100 * 1024 * 1024, max(cap // 2, 32 * 1024 * 1024)))


# --------------------------------- fused kernel ---------------------------------
def _seg_kernel(x_ref, k_ref, chan_ref, pool_ref, grid_ref, out_ref, *, n_feat, n_bn):
    """x_ref    : (rows_pad, f*p)    rows are channel-major (row = d*BN + b*N + n); pad rows = 0
       k_ref    : (f*p, H*W)         kron(Ar^T, Ac^T) separable bilinear-resize matrix
       chan_ref : (rows_pad, D)      channel indicator (host const; 0 on pad rows)
       pool_ref : (B, rows_pad)      pooling weights 1/(D*N) (host const; 0 on pad cols)
       grid_ref : (1, H*W)           grid-overlay mask (host const)
       out_ref  : (B, H*W)           lane-dense flattened images
    """
    # 1) bilinear resize of all (bn, d) tiles at once: one lane-dense MXU matmul.
    r = jnp.dot(x_ref[...], k_ref[...], preferred_element_type=jnp.float32)  # (rows, HW)

    # 2) ONE row-wise min/max pass over the big slab (XLU), then per-channel stats from
    #    the tiny (rows, 1) partials; build per-row scale/offset from D indicator ops.
    row_min = jnp.min(r, axis=-1, keepdims=True)                             # (rows, 1)
    row_max = jnp.max(r, axis=-1, keepdims=True)                             # (rows, 1)

    scale_rows = None
    offset_rows = None
    for d in range(n_feat):                      # static unroll; tiny per-channel work
        lo, hi = d * n_bn, (d + 1) * n_bn
        cmin = jnp.min(row_min[lo:hi, :])
        cmax = jnp.max(row_max[lo:hi, :])
        rng = cmax - cmin
        scale_d = jnp.where(rng < CH_EPS, 0.0, 1.0 / (rng + CH_EPS))  # 0 => channel zeroed
        off_d = -cmin * scale_d
        ind = chan_ref[:, d:d + 1]                                    # (rows, 1)
        s_c = scale_d * ind
        o_c = off_d * ind
        scale_rows = s_c if scale_rows is None else scale_rows + s_c
        offset_rows = o_c if offset_rows is None else offset_rows + o_c

    # 3) per-channel min-max normalization as ONE fused VPU pass, then channel-mean +
    #    node-mean as ONE pooling matmul (weights already include 1/(D*N)).
    rn = r * scale_rows + offset_rows                                        # (rows, HW)
    img = jnp.dot(pool_ref[...], rn, preferred_element_type=jnp.float32)     # (B, HW)

    # 4) grid overlay (host-side constant mask).
    img = img * grid_ref[...]

    # 5) final global min-max normalization (module's `normalize`): divide once, multiply.
    img = img - jnp.min(img)
    img = img * (1.0 / (jnp.max(img) + OUT_EPS))
    out_ref[...] = img.astype(out_ref.dtype)


# ----------------------------------- wrapper -------------------------------------
@jax.jit
def encode_seg(x):
    """Pallas implementation of SpatioTemporalPixelEncoder.forward(x, method='seg')."""
    B, T, N, D = x.shape
    BN = B * N
    f = PERIODICITY
    pad_left = (PERIODICITY - T % PERIODICITY) % PERIODICITY
    p = (T + pad_left) // PERIODICITY
    hw = IMAGE_SIZE * IMAGE_SIZE
    rows = D * BN
    rows_pad = ((rows + 7) // 8) * 8   # sublane-align total rows (pad rows are zero)

    # ---- layout plumbing (matches reshape / rearrange / replicate-pad in PyTorch) ----
    xr = jnp.transpose(jnp.reshape(x, (BN, T, D)), (0, 2, 1))            # (BN, D, T)
    if pad_left:
        xr = jnp.pad(xr, ((0, 0), (0, 0), (pad_left, 0)), mode="edge")   # replicate left
    x2d = jnp.transpose(jnp.reshape(xr, (BN, D, p, f)), (0, 1, 3, 2))    # (BN, D, f, p)
    # channel-major rows so per-channel stats come from contiguous row blocks
    xk = jnp.reshape(jnp.transpose(x2d, (1, 0, 2, 3)), (rows, f * p))    # (D*BN, f*p)
    if rows_pad != rows:
        xk = jnp.pad(xk, ((0, rows_pad - rows), (0, 0)))                 # zero pad rows

    # ---- trace-time constants (no in-kernel iota / div / mod) ----
    a_rows = _bilinear_resize_matrix(f, IMAGE_SIZE)                      # (H, f)
    a_cols = _bilinear_resize_matrix(p, IMAGE_SIZE)                      # (W, p)
    kron = jnp.asarray(np.kron(a_rows.T, a_cols.T))                      # (f*p, H*W)

    chan_ind = np.zeros((rows_pad, D), dtype=np.float32)                 # channel indicators
    for d in range(D):
        chan_ind[d * BN:(d + 1) * BN, d] = 1.0

    pool = np.zeros((B, rows_pad), dtype=np.float32)                     # mean over D and N
    w = 1.0 / (D * N)
    for b in range(B):
        for d in range(D):
            pool[b, d * BN + b * N: d * BN + (b + 1) * N] = w

    gs = IMAGE_SIZE // 8
    hh = np.arange(IMAGE_SIZE)[:, None]
    ww = np.arange(IMAGE_SIZE)[None, :]
    gridm = np.where((hh % gs == 0) | (ww % gs == 0), 0.95, 1.0)
    gridm = gridm.astype(np.float32).reshape(1, hw)

    kernel = functools.partial(_seg_kernel, n_feat=D, n_bn=BN)

    out_flat = pl.pallas_call(
        kernel,
        out_shape=jax.ShapeDtypeStruct((B, hw), jnp.float32),
        compiler_params=pltpu.CompilerParams(vmem_limit_bytes=_vmem_limit_bytes()),
    )(xk, kron, jnp.asarray(chan_ind), jnp.asarray(pool), jnp.asarray(gridm))

    return jnp.reshape(out_flat, (B, 1, IMAGE_SIZE, IMAGE_SIZE))


def spatio_temporal_pixel_encoder(x, adj_mx=None, method="seg"):
    if method == "seg":
        return encode_seg(x)
    # TODO(synk): 'gaf', 'rp' and 'spatial' representation branches (and PIL-based
    # save_images / input_resize) are host/alternate paths not ported to Pallas.
    raise NotImplementedError(f"method={method!r} not implemented in the Pallas port")


# ------------------------- pure-JAX reference (seg path) -------------------------
def reference_seg(x):
    B, T, N, D = x.shape
    BN = B * N
    f = PERIODICITY
    pad_left = (PERIODICITY - T % PERIODICITY) % PERIODICITY
    xr = jnp.transpose(jnp.reshape(x, (BN, T, D)), (0, 2, 1))
    if pad_left:
        xr = jnp.pad(xr, ((0, 0), (0, 0), (pad_left, 0)), mode="edge")
    p = xr.shape[-1] // PERIODICITY
    x2d = jnp.transpose(jnp.reshape(xr, (BN, D, p, f)), (0, 1, 3, 2))    # (BN, D, f, p)

    a_rows = jnp.asarray(_bilinear_resize_matrix(f, IMAGE_SIZE))          # (H, f)
    a_cols = jnp.asarray(_bilinear_resize_matrix(p, IMAGE_SIZE))          # (W, p)
    xres = jnp.einsum("hf,ndfp,wp->ndhw", a_rows, x2d, a_cols)            # (BN, D, H, W)

    chans = []
    for d in range(D):
        c = xres[:, d]
        cmin, cmax = jnp.min(c), jnp.max(c)
        rng = cmax - cmin
        chans.append(jnp.where(rng < CH_EPS, jnp.zeros_like(c),
                               (c - cmin) / (rng + CH_EPS)))
    xcomb = jnp.mean(jnp.stack(chans, axis=1), axis=1)                    # (BN, H, W)
    xfin = jnp.mean(jnp.reshape(xcomb, (B, N, IMAGE_SIZE, IMAGE_SIZE)), axis=1)

    gs = IMAGE_SIZE // 8
    hh = jnp.arange(IMAGE_SIZE)[:, None]
    ww = jnp.arange(IMAGE_SIZE)[None, :]
    gridm = jnp.where(((hh % gs) == 0) | ((ww % gs) == 0), 0.95, 1.0)
    v = xfin * gridm[None]
    v = v - jnp.min(v)
    v = v / (jnp.max(v) + OUT_EPS)
    return jnp.reshape(v, (B, 1, IMAGE_SIZE, IMAGE_SIZE))


# ------------------------------------ main ----------------------------------------
if __name__ == "__main__":
    key = jax.random.PRNGKey(0)
    B, T, N, D = 2, 12, 4, 4   # small shapes; T % periodicity != 0 exercises replicate pad
    x = jax.random.normal(key, (B, T, N, D), dtype=jnp.float32)

    out = jax.block_until_ready(spatio_temporal_pixel_encoder(x, method="seg"))
    ref = jax.block_until_ready(reference_seg(x))

    assert out.shape == (B, 1, IMAGE_SIZE, IMAGE_SIZE)
    assert bool(jnp.allclose(out, ref, rtol=1e-4, atol=1e-4)), "mismatch vs JAX reference"
    print("KERNEL_OK")
</pallas_src>

<mosaic_0001>
module attributes {stable_mosaic.version = 11 : i64} {
  func.func @_seg_kernel(%arg0: memref<32x16xf32, #tpu.memory_space<vmem>>, %arg1: memref<16x1024xf32, #tpu.memory_space<vmem>>, %arg2: memref<32x4xf32, #tpu.memory_space<vmem>>, %arg3: memref<2x32xf32, #tpu.memory_space<vmem>>, %arg4: memref<1x1024xf32, #tpu.memory_space<vmem>>, %arg5: memref<2x1024xf32, #tpu.memory_space<vmem>>) attributes {dimension_semantics = [], scalar_prefetch = 0 : i64, scratch_operands = 0 : i64, tpu.core_type = #tpu.core_type<tc>} {
    %c0 = arith.constant 0 : index
    %c0_0 = arith.constant 0 : index
    %0 = vector.load %arg0[%c0, %c0_0] : memref<32x16xf32, #tpu.memory_space<vmem>>, vector<32x16xf32>
    %c0_1 = arith.constant 0 : index
    %c0_2 = arith.constant 0 : index
    %1 = vector.load %arg1[%c0_1, %c0_2] : memref<16x1024xf32, #tpu.memory_space<vmem>>, vector<16x1024xf32>
    %cst = arith.constant dense<0.000000e+00> : vector<32x1024xf32>
    %2 = tpu.matmul %0, %1, %cst {dimension_numbers = #tpu.dot_dimension_numbers<[1], [0], [0], [1], [0, 0, 1, 1], [], []>} : vector<32x16xf32>, vector<16x1024xf32>, vector<32x1024xf32> -> vector<32x1024xf32>
    %cst_3 = arith.constant dense<0x7F800000> : vector<32xf32>
    %3 = vector.multi_reduction <minimumf>, %2, %cst_3 [1] : vector<32x1024xf32> to vector<32xf32>
    %4 = vector.shape_cast %3 : vector<32xf32> to vector<32x1xf32>
    %cst_4 = arith.constant dense<0xFF800000> : vector<32xf32>
    %5 = vector.multi_reduction <maximumf>, %2, %cst_4 [1] : vector<32x1024xf32> to vector<32xf32>
    %6 = vector.shape_cast %5 : vector<32xf32> to vector<32x1xf32>
    %7 = vector.extract_strided_slice %4 {offsets = [0, 0], sizes = [8, 1], strides = [1, 1]} : vector<32x1xf32> to vector<8x1xf32>
    %8 = vector.shape_cast %7 : vector<8x1xf32> to vector<1x8x1xf32>
    %cst_5 = arith.constant dense<0x7F800000> : vector<1xf32>
    %9 = vector.multi_reduction <minimumf>, %8, %cst_5 [1, 2] : vector<1x8x1xf32> to vector<1xf32>
    %10 = vector.shape_cast %9 : vector<1xf32> to vector<1x1x1xf32>
    %11 = vector.extract %10[0, 0, 0] : f32 from vector<1x1x1xf32>
    %12 = vector.extract_strided_slice %6 {offsets = [0, 0], sizes = [8, 1], strides = [1, 1]} : vector<32x1xf32> to vector<8x1xf32>
    %13 = vector.shape_cast %12 : vector<8x1xf32> to vector<1x8x1xf32>
    %cst_6 = arith.constant dense<0xFF800000> : vector<1xf32>
    %14 = vector.multi_reduction <maximumf>, %13, %cst_6 [1, 2] : vector<1x8x1xf32> to vector<1xf32>
    %15 = vector.shape_cast %14 : vector<1xf32> to vector<1x1x1xf32>
    %16 = vector.extract %15[0, 0, 0] : f32 from vector<1x1x1xf32>
    %17 = arith.subf %16, %11 : f32
    %cst_7 = arith.constant 9.99999993E-9 : f32
    %18 = arith.cmpf olt, %17, %cst_7 : f32
    %cst_8 = arith.constant 9.99999993E-9 : f32
    %19 = arith.addf %17, %cst_8 : f32
    %cst_9 = arith.constant 1.000000e+00 : f32
    %20 = arith.divf %cst_9, %19 : f32
    %cst_10 = arith.constant 0.000000e+00 : f32
    %21 = arith.select %18, %cst_10, %20 : f32
    %cst_11 = arith.constant 0.000000e+00 : f32
    %22 = arith.subf %cst_11, %11 : f32
    %23 = arith.mulf %22, %21 : f32
    %c0_12 = arith.constant 0 : index
    %c0_13 = arith.constant 0 : index
    %24 = vector.load %arg2[%c0_12, %c0_13] : memref<32x4xf32, #tpu.memory_space<vmem>>, vector<32x1xf32>
    %25 = vector.broadcast %21 : f32 to vector<32x1xf32>
    %26 = arith.mulf %25, %24 : vector<32x1xf32>
    %27 = vector.broadcast %23 : f32 to vector<32x1xf32>
    %28 = arith.mulf %27, %24 : vector<32x1xf32>
    %29 = vector.extract_strided_slice %4 {offsets = [8, 0], sizes = [8, 1], strides = [1, 1]} : vector<32x1xf32> to vector<8x1xf32>
    %30 = vector.shape_cast %29 : vector<8x1xf32> to vector<1x8x1xf32>
    %cst_14 = arith.constant dense<0x7F800000> : vector<1xf32>
    %31 = vector.multi_reduction <minimumf>, %30, %cst_14 [1, 2] : vector<1x8x1xf32> to vector<1xf32>
    %32 = vector.shape_cast %31 : vector<1xf32> to vector<1x1x1xf32>
    %33 = vector.extract %32[0, 0, 0] : f32 from vector<1x1x1xf32>
    %34 = vector.extract_strided_slice %6 {offsets = [8, 0], sizes = [8, 1], strides = [1, 1]} : vector<32x1xf32> to vector<8x1xf32>
    %35 = vector.shape_cast %34 : vector<8x1xf32> to vector<1x8x1xf32>
    %cst_15 = arith.constant dense<0xFF800000> : vector<1xf32>
    %36 = vector.multi_reduction <maximumf>, %35, %cst_15 [1, 2] : vector<1x8x1xf32> to vector<1xf32>
    %37 = vector.shape_cast %36 : vector<1xf32> to vector<1x1x1xf32>
    %38 = vector.extract %37[0, 0, 0] : f32 from vector<1x1x1xf32>
    %39 = arith.subf %38, %33 : f32
    %cst_16 = arith.constant 9.99999993E-9 : f32
    %40 = arith.cmpf olt, %39, %cst_16 : f32
    %cst_17 = arith.constant 9.99999993E-9 : f32
    %41 = arith.addf %39, %cst_17 : f32
    %cst_18 = arith.constant 1.000000e+00 : f32
    %42 = arith.divf %cst_18, %41 : f32
    %cst_19 = arith.constant 0.000000e+00 : f32
    %43 = arith.select %40, %cst_19, %42 : f32
    %cst_20 = arith.constant 0.000000e+00 : f32
    %44 = arith.subf %cst_20, %33 : f32
    %45 = arith.mulf %44, %43 : f32
    %c0_21 = arith.constant 0 : index
    %c1 = arith.constant 1 : index
    %46 = vector.load %arg2[%c0_21, %c1] : memref<32x4xf32, #tpu.memory_space<vmem>>, vector<32x1xf32>
    %47 = vector.broadcast %43 : f32 to vector<32x1xf32>
    %48 = arith.mulf %47, %46 : vector<32x1xf32>
    %49 = vector.broadcast %45 : f32 to vector<32x1xf32>
    %50 = arith.mulf %49, %46 : vector<32x1xf32>
    %51 = arith.addf %26, %48 : vector<32x1xf32>
    %52 = arith.addf %28, %50 : vector<32x1xf32>
    %53 = vector.extract_strided_slice %4 {offsets = [16, 0], sizes = [8, 1], strides = [1, 1]} : vector<32x1xf32> to vector<8x1xf32>
    %54 = vector.shape_cast %53 : vector<8x1xf32> to vector<1x8x1xf32>
    %cst_22 = arith.constant dense<0x7F800000> : vector<1xf32>
    %55 = vector.multi_reduction <minimumf>, %54, %cst_22 [1, 2] : vector<1x8x1xf32> to vector<1xf32>
    %56 = vector.shape_cast %55 : vector<1xf32> to vector<1x1x1xf32>
    %57 = vector.extract %56[0, 0, 0] : f32 from vector<1x1x1xf32>
    %58 = vector.extract_strided_slice %6 {offsets = [16, 0], sizes = [8, 1], strides = [1, 1]} : vector<32x1xf32> to vector<8x1xf32>
    %59 = vector.shape_cast %58 : vector<8x1xf32> to vector<1x8x1xf32>
    %cst_23 = arith.constant dense<0xFF800000> : vector<1xf32>
    %60 = vector.multi_reduction <maximumf>, %59, %cst_23 [1, 2] : vector<1x8x1xf32> to vector<1xf32>
    %61 = vector.shape_cast %60 : vector<1xf32> to vector<1x1x1xf32>
    %62 = vector.extract %61[0, 0, 0] : f32 from vector<1x1x1xf32>
    %63 = arith.subf %62, %57 : f32
    %cst_24 = arith.constant 9.99999993E-9 : f32
    %64 = arith.cmpf olt, %63, %cst_24 : f32
    %cst_25 = arith.constant 9.99999993E-9 : f32
    %65 = arith.addf %63, %cst_25 : f32
    %cst_26 = arith.constant 1.000000e+00 : f32
    %66 = arith.divf %cst_26, %65 : f32
    %cst_27 = arith.constant 0.000000e+00 : f32
    %67 = arith.select %64, %cst_27, %66 : f32
    %cst_28 = arith.constant 0.000000e+00 : f32
    %68 = arith.subf %cst_28, %57 : f32
    %69 = arith.mulf %68, %67 : f32
    %c0_29 = arith.constant 0 : index
    %c2 = arith.constant 2 : index
    %70 = vector.load %arg2[%c0_29, %c2] : memref<32x4xf32, #tpu.memory_space<vmem>>, vector<32x1xf32>
    %71 = vector.broadcast %67 : f32 to vector<32x1xf32>
    %72 = arith.mulf %71, %70 : vector<32x1xf32>
    %73 = vector.broadcast %69 : f32 to vector<32x1xf32>
    %74 = arith.mulf %73, %70 : vector<32x1xf32>
    %75 = arith.addf %51, %72 : vector<32x1xf32>
    %76 = arith.addf %52, %74 : vector<32x1xf32>
    %77 = vector.extract_strided_slice %4 {offsets = [24, 0], sizes = [8, 1], strides = [1, 1]} : vector<32x1xf32> to vector<8x1xf32>
    %78 = vector.shape_cast %77 : vector<8x1xf32> to vector<1x8x1xf32>
    %cst_30 = arith.constant dense<0x7F800000> : vector<1xf32>
    %79 = vector.multi_reduction <minimumf>, %78, %cst_30 [1, 2] : vector<1x8x1xf32> to vector<1xf32>
    %80 = vector.shape_cast %79 : vector<1xf32> to vector<1x1x1xf32>
    %81 = vector.extract %80[0, 0, 0] : f32 from vector<1x1x1xf32>
    %82 = vector.extract_strided_slice %6 {offsets = [24, 0], sizes = [8, 1], strides = [1, 1]} : vector<32x1xf32> to vector<8x1xf32>
    %83 = vector.shape_cast %82 : vector<8x1xf32> to vector<1x8x1xf32>
    %cst_31 = arith.constant dense<0xFF800000> : vector<1xf32>
    %84 = vector.multi_reduction <maximumf>, %83, %cst_31 [1, 2] : vector<1x8x1xf32> to vector<1xf32>
    %85 = vector.shape_cast %84 : vector<1xf32> to vector<1x1x1xf32>
    %86 = vector.extract %85[0, 0, 0] : f32 from vector<1x1x1xf32>
    %87 = arith.subf %86, %81 : f32
    %cst_32 = arith.constant 9.99999993E-9 : f32
    %88 = arith.cmpf olt, %87, %cst_32 : f32
    %cst_33 = arith.constant 9.99999993E-9 : f32
    %89 = arith.addf %87, %cst_33 : f32
    %cst_34 = arith.constant 1.000000e+00 : f32
    %90 = arith.divf %cst_34, %89 : f32
    %cst_35 = arith.constant 0.000000e+00 : f32
    %91 = arith.select %88, %cst_35, %90 : f32
    %cst_36 = arith.constant 0.000000e+00 : f32
    %92 = arith.subf %cst_36, %81 : f32
    %93 = arith.mulf %92, %91 : f32
    %c0_37 = arith.constant 0 : index
    %c3 = arith.constant 3 : index
    %94 = vector.load %arg2[%c0_37, %c3] : memref<32x4xf32, #tpu.memory_space<vmem>>, vector<32x1xf32>
    %95 = vector.broadcast %91 : f32 to vector<32x1xf32>
    %96 = arith.mulf %95, %94 : vector<32x1xf32>
    %97 = vector.broadcast %93 : f32 to vector<32x1xf32>
    %98 = arith.mulf %97, %94 : vector<32x1xf32>
    %99 = arith.addf %75, %96 : vector<32x1xf32>
    %100 = arith.addf %76, %98 : vector<32x1xf32>
    %101 = vector.broadcast %99 : vector<32x1xf32> to vector<32x1024xf32>
    %102 = arith.mulf %2, %101 : vector<32x1024xf32>
    %103 = vector.broadcast %100 : vector<32x1xf32> to vector<32x1024xf32>
    %104 = arith.addf %102, %103 : vector<32x1024xf32>
    %c0_38 = arith.constant 0 : index
    %c0_39 = arith.constant 0 : index
    %105 = vector.load %arg3[%c0_38, %c0_39] : memref<2x32xf32, #tpu.memory_space<vmem>>, vector<2x32xf32>
    %cst_40 = arith.constant dense<0.000000e+00> : vector<2x1024xf32>
    %106 = tpu.matmul %105, %104, %cst_40 {dimension_numbers = #tpu.dot_dimension_numbers<[1], [0], [0], [1], [0, 0, 1, 1], [], []>} : vector<2x32xf32>, vector<32x1024xf32>, vector<2x1024xf32> -> vector<2x1024xf32>
    %c0_41 = arith.constant 0 : index
    %c0_42 = arith.constant 0 : index
    %107 = vector.load %arg4[%c0_41, %c0_42] : memref<1x1024xf32, #tpu.memory_space<vmem>>, vector<1x1024xf32>
    %108 = vector.broadcast %107 : vector<1x1024xf32> to vector<2x1024xf32>
    %109 = arith.mulf %106, %108 : vector<2x1024xf32>
    %110 = vector.shape_cast %109 : vector<2x1024xf32> to vector<1x2x1024xf32>
    %cst_43 = arith.constant dense<0x7F800000> : vector<1xf32>
    %111 = vector.multi_reduction <minimumf>, %110, %cst_43 [1, 2] : vector<1x2x1024xf32> to vector<1xf32>
    %112 = vector.shape_cast %111 : vector<1xf32> to vector<1x1x1xf32>
    %113 = vector.extract %112[0, 0, 0] : f32 from vector<1x1x1xf32>
    %114 = vector.broadcast %113 : f32 to vector<2x1024xf32>
    %115 = arith.subf %109, %114 : vector<2x1024xf32>
    %116 = vector.shape_cast %115 : vector<2x1024xf32> to vector<1x2x1024xf32>
    %cst_44 = arith.constant dense<0xFF800000> : vector<1xf32>
    %117 = vector.multi_reduction <maximumf>, %116, %cst_44 [1, 2] : vector<1x2x1024xf32> to vector<1xf32>
    %118 = vector.shape_cast %117 : vector<1xf32> to vector<1x1x1xf32>
    %119 = vector.extract %118[0, 0, 0] : f32 from vector<1x1x1xf32>
    %cst_45 = arith.constant 9.99999997E-7 : f32
    %120 = arith.addf %119, %cst_45 : f32
    %cst_46 = arith.constant 1.000000e+00 : f32
    %121 = arith.divf %cst_46, %120 : f32
    %122 = vector.broadcast %121 : f32 to vector<2x1024xf32>
    %123 = arith.mulf %115, %122 : vector<2x1024xf32>
    %c0_47 = arith.constant 0 : index
    %c0_48 = arith.constant 0 : index
    %124 = vector.load %arg5[%c0_47, %c0_48] : memref<2x1024xf32, #tpu.memory_space<vmem>>, vector<2x1024xf32>
    tpu.vector_store %arg5[%c0_47, %c0_48], %123 {strides = array<i32>} : memref<2x1024xf32, #tpu.memory_space<vmem>>, vector<2x1024xf32>,
    return
  }
}

</mosaic_0001>

<llo_original>
// kernel: encode_seg.1
$region0: #{encode_seg.1}
  #allocation0 [shape = 'u32[]', space=smem, size = 0x4, offset = 0x4, fixed_abs, tag = 'smem constant byte address 0x4 - core index']
  #allocation1 [shape = 'u32[72,128]{1,0:T(1,128)}', space=vmem, size = 0x9000, scoped, tag = 'internal scratch']
  %s0 = inlined_call_operand.vmem [shape: f32[32,16], index: 0, kind: input, shape index: {}]
  %s1 = inlined_call_operand.vmem [shape: f32[16,1024], index: 1, kind: input, shape index: {}]
  %s2 = inlined_call_operand.vmem [shape: f32[32,4], index: 2, kind: input, shape index: {}]
  %s3 = inlined_call_operand.vmem [shape: f32[2,32], index: 3, kind: input, shape index: {}]
  %s4 = inlined_call_operand.vmem [shape: f32[1,1024], index: 4, kind: input, shape index: {}]
  %s5 = inlined_call_operand.vmem [shape: f32[2,1024], index: 5, kind: output, shape index: {}]
  %s6 = sld [smem:[#allocation0]]
  $region30: #{encode_seg.1} parent=0
    _
  %s8 = ssub.s32 1, %s6
  %s9 = scalar_select 0, %s8, %s6
  // Predicated region
  $region2: #{encode_seg.1} parent=0 // pred_check
    _
  $region3: #{encode_seg.1} parent=0 // pred_check_branch
    %11 = sbr.rel (0) target = $region5
  $region4: #{encode_seg.1} parent=0 // pred_region
    _
  $region5: #{encode_seg.1} parent=0 // pred_fallthru
    _
  // Predicated region
  $region6: #{encode_seg.1} parent=0 // pred_check
    _
  $region7: #{encode_seg.1} parent=0 // pred_check_branch
    %13 = sbr.rel (0) target = $region9
  $region8: #{encode_seg.1} parent=0 // pred_region
    _
  $region9: #{encode_seg.1} parent=0 // pred_fallthru
    _
  // Predicated region
  $region10: #{encode_seg.1} parent=0 // pred_check
    _
  $region11: #{encode_seg.1} parent=0 // pred_check_branch
    %15 = sbr.rel (0) target = $region13
  $region12: #{encode_seg.1} parent=0 // pred_region
    _
  $region13: #{encode_seg.1} parent=0 // pred_fallthru
    _
  // Predicated region
  $region14: #{encode_seg.1} parent=0 // pred_check
    _
  $region15: #{encode_seg.1} parent=0 // pred_check_branch
    %17 = sbr.rel (0) target = $region17
  $region16: #{encode_seg.1} parent=0 // pred_region
    _
  $region17: #{encode_seg.1} parent=0 // pred_fallthru
    _
  // Predicated region
  $region18: #{encode_seg.1} parent=0 // pred_check
    _
  $region19: #{encode_seg.1} parent=0 // pred_check_branch
    %19 = sbr.rel (0) target = $region21
  $region20: #{encode_seg.1} parent=0 // pred_region
    _
  $region21: #{encode_seg.1} parent=0 // pred_fallthru
    _
  %v20 = vld [vmem:[%s0] sm:$0xff]
  %v21 = vld [vmem:[%s0 + $0x8] sm:$0xff]
  %v22 = vld [vmem:[%s0 + $0x10] sm:$0xff]
  %v23 = vld [vmem:[%s0 + $0x18] sm:$0xff]
  %v24 = vld [vmem:[%s1] sm:$0xff]
  %v25 = vld [vmem:[%s1 + $0x8] sm:$0xff]
  %v26 = vld [vmem:[%s1 + $0x10] sm:$0xff]
  %v27 = vld [vmem:[%s1 + $0x18] sm:$0xff]
  %v28 = vld [vmem:[%s1 + $0x20] sm:$0xff]
  %v29 = vld [vmem:[%s1 + $0x28] sm:$0xff]
  %v30 = vld [vmem:[%s1 + $0x30] sm:$0xff]
  %v31 = vld [vmem:[%s1 + $0x38] sm:$0xff]
  %v32 = vld [vmem:[%s1 + $0x40] sm:$0xff]
  %v33 = vld [vmem:[%s1 + $0x48] sm:$0xff]
  %v34 = vld [vmem:[%s1 + $0x50] sm:$0xff]
  %v35 = vld [vmem:[%s1 + $0x58] sm:$0xff]
  %v36 = vld [vmem:[%s1 + $0x60] sm:$0xff]
  %v37 = vld [vmem:[%s1 + $0x68] sm:$0xff]
  %v38 = vld [vmem:[%s1 + $0x70] sm:$0xff]
  %v39 = vld [vmem:[%s1 + $0x78] sm:$0xff]
  %vm40 = vcmask 130048
  %v42 = vsel %vm40, %v20, 0
  %v45 = vsel %vm40, %v21, 0
  %v48 = vsel %vm40, %v22, 0
  %v51 = vsel %vm40, %v23, 0
  %53 = vmatpush.msra.mxu0 0.0
  %54 = vmatpush.msra.mxu0 0.0
  %55 = vmatpush.msra.mxu0 0.0
  %56 = vmatpush.msra.mxu0 0.0
  %57 = vmatpush.msra.mxu0 0.0
  %58 = vmatpush.msra.mxu0 0.0
  %59 = vmatpush.msra.mxu0 0.0
  %60 = vmatpush.msra.mxu0 0.0
  %61 = vmatpush.msra.mxu0 0.0
  %62 = vmatpush.msra.mxu0 0.0
  %63 = vmatpush.msra.mxu0 0.0
  %64 = vmatpush.msra.mxu0 0.0
  %65 = vmatpush.msra.mxu0 0.0
  %66 = vmatpush.msra.mxu0 0.0
  %67 = vmatpush.msra.mxu0 %v32
  %68 = vmatpush.msra.mxu0 %v24
  %69 = vmatmul.f32.gmra.mxu0 %v42
  %v70 = vpop.f32.mrf.mxu0
  %v71 = vadd.f32 0.0, %v70
  %72 = vmatmul.f32.gmra.mxu0 %v45
  %v73 = vpop.f32.mrf.mxu0
  %v74 = vadd.f32 0.0, %v73
  %75 = vmatmul.f32.gmra.mxu0 %v48
  %v76 = vpop.f32.mrf.mxu0
  %v77 = vadd.f32 0.0, %v76
  %78 = vmatmul.f32.gmra.mxu0 %v51
  %v79 = vpop.f32.mrf.mxu0
  %v80 = vadd.f32 0.0, %v79
  %81 = vdwg.mxu0
  %82 = vmatpush.msra.mxu0 0.0
  %83 = vmatpush.msra.mxu0 0.0
  %84 = vmatpush.msra.mxu0 0.0
  %85 = vmatpush.msra.mxu0 0.0
  %86 = vmatpush.msra.mxu0 0.0
  %87 = vmatpush.msra.mxu0 0.0
  %88 = vmatpush.msra.mxu0 0.0
  %89 = vmatpush.msra.mxu0 0.0
  %90 = vmatpush.msra.mxu0 0.0
  %91 = vmatpush.msra.mxu0 0.0
  %92 = vmatpush.msra.mxu0 0.0
  %93 = vmatpush.msra.mxu0 0.0
  %94 = vmatpush.msra.mxu0 0.0
  %95 = vmatpush.msra.mxu0 0.0
  %96 = vmatpush.msra.mxu0 %v33
  %97 = vmatpush.msra.mxu0 %v25
  %98 = vmatmul.f32.gmra.mxu0 %v42
  %v99 = vpop.f32.mrf.mxu0
  %v100 = vadd.f32 0.0, %v99
  %101 = vmatmul.f32.gmra.mxu0 %v45
  %v102 = vpop.f32.mrf.mxu0
  %v103 = vadd.f32 0.0, %v102
  %104 = vmatmul.f32.gmra.mxu0 %v48
  %v105 = vpop.f32.mrf.mxu0
  %v106 = vadd.f32 0.0, %v105
  %107 = vmatmul.f32.gmra.mxu0 %v51
  %v108 = vpop.f32.mrf.mxu0
  %v109 = vadd.f32 0.0, %v108
  %110 = vdwg.mxu0
  %111 = vmatpush.msra.mxu0 0.0
  %112 = vmatpush.msra.mxu0 0.0
  %113 = vmatpush.msra.mxu0 0.0
  %114 = vmatpush.msra.mxu0 0.0
  %115 = vmatpush.msra.mxu0 0.0
  %116 = vmatpush.msra.mxu0 0.0
  %117 = vmatpush.msra.mxu0 0.0
  %118 = vmatpush.msra.mxu0 0.0
  %119 = vmatpush.msra.mxu0 0.0
  %120 = vmatpush.msra.mxu0 0.0
  %121 = vmatpush.msra.mxu0 0.0
  %122 = vmatpush.msra.mxu0 0.0
  %123 = vmatpush.msra.mxu0 0.0
  %124 = vmatpush.msra.mxu0 0.0
  %125 = vmatpush.msra.mxu0 %v34
  %126 = vmatpush.msra.mxu0 %v26
  %127 = vmatmul.f32.gmra.mxu0 %v42
  %v128 = vpop.f32.mrf.mxu0
  %v129 = vadd.f32 0.0, %v128
  %130 = vmatmul.f32.gmra.mxu0 %v45
  %v131 = vpop.f32.mrf.mxu0
  %v132 = vadd.f32 0.0, %v131
  %133 = vmatmul.f32.gmra.mxu0 %v48
  %v134 = vpop.f32.mrf.mxu0
  %v135 = vadd.f32 0.0, %v134
  %136 = vmatmul.f32.gmra.mxu0 %v51
  %v137 = vpop.f32.mrf.mxu0
  %v138 = vadd.f32 0.0, %v137
  %139 = vdwg.mxu0
  %140 = vmatpush.msra.mxu0 0.0
  %141 = vmatpush.msra.mxu0 0.0
  %142 = vmatpush.msra.mxu0 0.0
  %143 = vmatpush.msra.mxu0 0.0
  %144 = vmatpush.msra.mxu0 0.0
  %145 = vmatpush.msra.mxu0 0.0
  %146 = vmatpush.msra.mxu0 0.0
  %147 = vmatpush.msra.mxu0 0.0
  %148 = vmatpush.msra.mxu0 0.0
  %149 = vmatpush.msra.mxu0 0.0
  %150 = vmatpush.msra.mxu0 0.0
  %151 = vmatpush.msra.mxu0 0.0
  %152 = vmatpush.msra.mxu0 0.0
  %153 = vmatpush.msra.mxu0 0.0
  %154 = vmatpush.msra.mxu0 %v35
  %155 = vmatpush.msra.mxu0 %v27
  %156 = vmatmul.f32.gmra.mxu0 %v42
  %v157 = vpop.f32.mrf.mxu0
  %v158 = vadd.f32 0.0, %v157
  %159 = vmatmul.f32.gmra.mxu0 %v45
  %v160 = vpop.f32.mrf.mxu0
  %v161 = vadd.f32 0.0, %v160
  %162 = vmatmul.f32.gmra.mxu0 %v48
  %v163 = vpop.f32.mrf.mxu0
  %v164 = vadd.f32 0.0, %v163
  %165 = vmatmul.f32.gmra.mxu0 %v51
  %v166 = vpop.f32.mrf.mxu0
  %v167 = vadd.f32 0.0, %v166
  %168 = vdwg.mxu0
  %169 = vmatpush.msra.mxu0 0.0
  %170 = vmatpush.msra.mxu0 0.0
  %171 = vmatpush.msra.mxu0 0.0
  %172 = vmatpush.msra.mxu0 0.0
  %173 = vmatpush.msra.mxu0 0.0
  %174 = vmatpush.msra.mxu0 0.0
  %175 = vmatpush.msra.mxu0 0.0
  %176 = vmatpush.msra.mxu0 0.0
  %177 = vmatpush.msra.mxu0 0.0
  %178 = vmatpush.msra.mxu0 0.0
  %179 = vmatpush.msra.mxu0 0.0
  %180 = vmatpush.msra.mxu0 0.0
  %181 = vmatpush.msra.mxu0 0.0
  %182 = vmatpush.msra.mxu0 0.0
  %183 = vmatpush.msra.mxu0 %v36
  %184 = vmatpush.msra.mxu0 %v28
  %185 = vmatmul.f32.gmra.mxu0 %v42
  %v186 = vpop.f32.mrf.mxu0
  %v187 = vadd.f32 0.0, %v186
  %188 = vmatmul.f32.gmra.mxu0 %v45
  %v189 = vpop.f32.mrf.mxu0
  %v190 = vadd.f32 0.0, %v189
  %191 = vmatmul.f32.gmra.mxu0 %v48
  %v192 = vpop.f32.mrf.mxu0
  %v193 = vadd.f32 0.0, %v192
  %194 = vmatmul.f32.gmra.mxu0 %v51
  %v195 = vpop.f32.mrf.mxu0
  %v196 = vadd.f32 0.0, %v195
  %197 = vdwg.mxu0
  %198 = vmatpush.msra.mxu0 0.0
  %199 = vmatpush.msra.mxu0 0.0
  %200 = vmatpush.msra.mxu0 0.0
  %201 = vmatpush.msra.mxu0 0.0
  %202 = vmatpush.msra.mxu0 0.0
  %203 = vmatpush.msra.mxu0 0.0
  %204 = vmatpush.msra.mxu0 0.0
  %205 = vmatpush.msra.mxu0 0.0
  %206 = vmatpush.msra.mxu0 0.0
  %207 = vmatpush.msra.mxu0 0.0
  %208 = vmatpush.msra.mxu0 0.0
  %209 = vmatpush.msra.mxu0 0.0
  %210 = vmatpush.msra.mxu0 0.0
  %211 = vmatpush.msra.mxu0 0.0
  %212 = vmatpush.msra.mxu0 %v37
  %213 = vmatpush.msra.mxu0 %v29
  %214 = vmatmul.f32.gmra.mxu0 %v42
  %v215 = vpop.f32.mrf.mxu0
  %v216 = vadd.f32 0.0, %v215
  %217 = vmatmul.f32.gmra.mxu0 %v45
  %v218 = vpop.f32.mrf.mxu0
  %v219 = vadd.f32 0.0, %v218
  %220 = vmatmul.f32.gmra.mxu0 %v48
  %v221 = vpop.f32.mrf.mxu0
  %v222 = vadd.f32 0.0, %v221
  %223 = vmatmul.f32.gmra.mxu0 %v51
  %v224 = vpop.f32.mrf.mxu0
  %v225 = vadd.f32 0.0, %v224
  %226 = vdwg.mxu0
  %227 = vmatpush.msra.mxu0 0.0
  %228 = vmatpush.msra.mxu0 0.0
  %229 = vmatpush.msra.mxu0 0.0
  %230 = vmatpush.msra.mxu0 0.0
  %231 = vmatpush.msra.mxu0 0.0
  %232 = vmatpush.msra.mxu0 0.0
  %233 = vmatpush.msra.mxu0 0.0
  %234 = vmatpush.msra.mxu0 0.0
  %235 = vmatpush.msra.mxu0 0.0
  %236 = vmatpush.msra.mxu0 0.0
  %237 = vmatpush.msra.mxu0 0.0
  %238 = vmatpush.msra.mxu0 0.0
  %239 = vmatpush.msra.mxu0 0.0
  %240 = vmatpush.msra.mxu0 0.0
  %241 = vmatpush.msra.mxu0 %v38
  %242 = vmatpush.msra.mxu0 %v30
  %243 = vmatmul.f32.gmra.mxu0 %v42
  %v244 = vpop.f32.mrf.mxu0
  %v245 = vadd.f32 0.0, %v244
  %246 = vmatmul.f32.gmra.mxu0 %v45
  %v247 = vpop.f32.mrf.mxu0
  %v248 = vadd.f32 0.0, %v247
  %249 = vmatmul.f32.gmra.mxu0 %v48
  %v250 = vpop.f32.mrf.mxu0
  %v251 = vadd.f32 0.0, %v250
  %252 = vmatmul.f32.gmra.mxu0 %v51
  %v253 = vpop.f32.mrf.mxu0
  %v254 = vadd.f32 0.0, %v253
  %255 = vdwg.mxu0
  %256 = vmatpush.msra.mxu0 0.0
  %257 = vmatpush.msra.mxu0 0.0
  %258 = vmatpush.msra.mxu0 0.0
  %259 = vmatpush.msra.mxu0 0.0
  %260 = vmatpush.msra.mxu0 0.0
  %261 = vmatpush.msra.mxu0 0.0
  %262 = vmatpush.msra.mxu0 0.0
  %263 = vmatpush.msra.mxu0 0.0
  %264 = vmatpush.msra.mxu0 0.0
  %265 = vmatpush.msra.mxu0 0.0
  %266 = vmatpush.msra.mxu0 0.0
  %267 = vmatpush.msra.mxu0 0.0
  %268 = vmatpush.msra.mxu0 0.0
  %269 = vmatpush.msra.mxu0 0.0
  %270 = vmatpush.msra.mxu0 %v39
  %271 = vmatpush.msra.mxu0 %v31
  %272 = vmatmul.f32.gmra.mxu0 %v42
  %v273 = vpop.f32.mrf.mxu0
  %v274 = vadd.f32 0.0, %v273
  %275 = vmatmul.f32.gmra.mxu0 %v45
  %v276 = vpop.f32.mrf.mxu0
  %v277 = vadd.f32 0.0, %v276
  %278 = vmatmul.f32.gmra.mxu0 %v48
  %v279 = vpop.f32.mrf.mxu0
  %v280 = vadd.f32 0.0, %v279
  %281 = vmatmul.f32.gmra.mxu0 %v51
  %v282 = vpop.f32.mrf.mxu0
  %v283 = vadd.f32 0.0, %v282
  %284 = vdwg.mxu0
  %v285 = vmin.f32 %v71, %v100
  %v286 = vmin.f32 %v285, %v129
  %v287 = vmin.f32 %v286, %v158
  %v288 = vmin.f32 %v287, %v187
  %v289 = vmin.f32 %v288, %v216
  %v290 = vmin.f32 %v289, %v245
  %v291 = vmin.f32 %v290, %v274
  %292 = vmin.xlane.f32.xlu0 %v291
  %v293 = vpop.xlane.xlu0 %292
  %v294 = vmin.f32 %v74, %v103
  %v295 = vmin.f32 %v294, %v132
  %v296 = vmin.f32 %v295, %v161
  %v297 = vmin.f32 %v296, %v190
  %v298 = vmin.f32 %v297, %v219
  %v299 = vmin.f32 %v298, %v248
  %v300 = vmin.f32 %v299, %v277
  %301 = vmin.xlane.f32.xlu0 %v300
  %v302 = vpop.xlane.xlu0 %301
  %v303 = vmin.f32 %v77, %v106
  %v304 = vmin.f32 %v303, %v135
  %v305 = vmin.f32 %v304, %v164
  %v306 = vmin.f32 %v305, %v193
  %v307 = vmin.f32 %v306, %v222
  %v308 = vmin.f32 %v307, %v251
  %v309 = vmin.f32 %v308, %v280
  %310 = vmin.xlane.f32.xlu0 %v309
  %v311 = vpop.xlane.xlu0 %310
  %v312 = vmin.f32 %v80, %v109
  %v313 = vmin.f32 %v312, %v138
  %v314 = vmin.f32 %v313, %v167
  %v315 = vmin.f32 %v314, %v196
  %v316 = vmin.f32 %v315, %v225
  %v317 = vmin.f32 %v316, %v254
  %v318 = vmin.f32 %v317, %v283
  %319 = vmin.xlane.f32.xlu0 %v318
  %v320 = vpop.xlane.xlu0 %319
  %v321 = vmax.f32 %v71, %v100
  %v322 = vmax.f32 %v321, %v129
  %v323 = vmax.f32 %v322, %v158
  %v324 = vmax.f32 %v323, %v187
  %v325 = vmax.f32 %v324, %v216
  %v326 = vmax.f32 %v325, %v245
  %v327 = vmax.f32 %v326, %v274
  %328 = vmax.xlane.f32.xlu0 %v327
  %v329 = vpop.xlane.xlu0 %328
  %v330 = vmax.f32 %v74, %v103
  %v331 = vmax.f32 %v330, %v132
  %v332 = vmax.f32 %v331, %v161
  %v333 = vmax.f32 %v332, %v190
  %v334 = vmax.f32 %v333, %v219
  %v335 = vmax.f32 %v334, %v248
  %v336 = vmax.f32 %v335, %v277
  %337 = vmax.xlane.f32.xlu0 %v336
  %v338 = vpop.xlane.xlu0 %337
  %v339 = vmax.f32 %v77, %v106
  %v340 = vmax.f32 %v339, %v135
  %v341 = vmax.f32 %v340, %v164
  %v342 = vmax.f32 %v341, %v193
  %v343 = vmax.f32 %v342, %v222
  %v344 = vmax.f32 %v343, %v251
  %v345 = vmax.f32 %v344, %v280
  %346 = vmax.xlane.f32.xlu0 %v345
  %v347 = vpop.xlane.xlu0 %346
  %v348 = vmax.f32 %v80, %v109
  %v349 = vmax.f32 %v348, %v138
  %v350 = vmax.f32 %v349, %v167
  %v351 = vmax.f32 %v350, %v196
  %v352 = vmax.f32 %v351, %v225
  %v353 = vmax.f32 %v352, %v254
  %v354 = vmax.f32 %v353, %v283
  %355 = vmax.xlane.f32.xlu0 %v354
  %v356 = vpop.xlane.xlu0 %355
  %v357 = vrot.slane %v293, 4
  %v358 = vmin.f32 %v293, %v357
  %v359 = vrot.slane %v358, 2
  %v360 = vmin.f32 %v358, %v359
  %v361 = vrot.slane %v360, 1
  %v362 = vmin.f32 %v360, %v361
  %s363 = vtos %v362
  %v364 = vrot.slane %v329, 4
  %v365 = vmax.f32 %v329, %v364
  %v366 = vrot.slane %v365, 2
  %v367 = vmax.f32 %v365, %v366
  %v368 = vrot.slane %v367, 1
  %v369 = vmax.f32 %v367, %v368
  %s370 = vtos %v369
  %s371 = ssub.f32 %s370, %s363
  %p372 = scmp.lt.f32.partialorder %s371, 1e-08
  %s373 = sadd.f32 %s371, 1e-08
  %v374 = vstv %s373
  %v375 = vrcp.pop %v374
  %v376 = vmul.f32 %v374, %v375
  %v377 = vsub.f32 1.0, %v376
  %v378 = vmul.f32 %v375, %v377
  %v379 = vadd.f32 %v375, %v378
  %vm380 = vweird.f32 %v374
  %vm381 = vweird.f32 %v375
  %vm382 = vmor %vm380, %vm381
  %v383 = vsel %vm382, %v375, %v379
  %v384 = vand.u32 2147483647, %v374
  %vm385 = vcmp.eq.f32.partialorder %v384, 8.507059e+37
  %v386 = vand.u32 %v374, 2147483648
  %v387 = vor.u32 1.1754944e-38, %v386
  %v388 = vsel %vm385, %v387, %v383
  %s389 = vtos %v388
  %s390 = scalar_select %p372, 0.0, %s389
  %s391 = ssub.f32 0.0, %s363
  %s392 = smul.f32 %s391, %s390
  %v393 = vld [vmem:[%s2] sm:$0xff]
  %v394 = vld [vmem:[%s2 + $0x8] sm:$0xff]
  %v395 = vld [vmem:[%s2 + $0x10] sm:$0xff]
  %v396 = vld [vmem:[%s2 + $0x18] sm:$0xff]
  %v397 = vstv %s390
  %v398 = vmul.f32 %v397, %v393
  %v399 = vmul.f32 %v397, %v394
  %v400 = vmul.f32 %v397, %v395
  %v401 = vmul.f32 %v397, %v396
  %v402 = vstv %s392
  %v403 = vmul.f32 %v402, %v393
  %v404 = vmul.f32 %v402, %v394
  %v405 = vmul.f32 %v402, %v395
  %v406 = vmul.f32 %v402, %v396
  %v407 = vrot.slane %v302, 4
  %v408 = vmin.f32 %v302, %v407
  %v409 = vrot.slane %v408, 2
  %v410 = vmin.f32 %v408, %v409
  %v411 = vrot.slane %v410, 1
  %v412 = vmin.f32 %v410, %v411
  %s413 = vtos %v412
  %v414 = vrot.slane %v338, 4
  %v415 = vmax.f32 %v338, %v414
  %v416 = vrot.slane %v415, 2
  %v417 = vmax.f32 %v415, %v416
  %v418 = vrot.slane %v417, 1
  %v419 = vmax.f32 %v417, %v418
  %s420 = vtos %v419
  %s421 = ssub.f32 %s420, %s413
  %p422 = scmp.lt.f32.partialorder %s421, 1e-08
  %s423 = sadd.f32 %s421, 1e-08
  %v424 = vstv %s423
  %v425 = vrcp.pop %v424
  %v426 = vmul.f32 %v424, %v425
  %v427 = vsub.f32 1.0, %v426
  %v428 = vmul.f32 %v425, %v427
  %v429 = vadd.f32 %v425, %v428
  %vm430 = vweird.f32 %v424
  %vm431 = vweird.f32 %v425
  %vm432 = vmor %vm430, %vm431
  %v433 = vsel %vm432, %v425, %v429
  %v434 = vand.u32 2147483647, %v424
  %vm435 = vcmp.eq.f32.partialorder %v434, 8.507059e+37
  %v436 = vand.u32 %v424, 2147483648
  %v437 = vor.u32 1.1754944e-38, %v436
  %v438 = vsel %vm435, %v437, %v433
  %s439 = vtos %v438
  %s440 = scalar_select %p422, 0.0, %s439
  %s441 = ssub.f32 0.0, %s413
  %s442 = smul.f32 %s441, %s440
  %v443 = vstv %s440
  %v444 = vmul.f32 %v443, %v393
  %v445 = vmul.f32 %v443, %v394
  %v446 = vmul.f32 %v443, %v395
  %v447 = vmul.f32 %v443, %v396
  %v448 = vstv %s442
  %v449 = vmul.f32 %v448, %v393
  %v450 = vmul.f32 %v448, %v394
  %v451 = vmul.f32 %v448, %v395
  %v452 = vmul.f32 %v448, %v396
  %457 = vrot.lane.b32.xlu0 %v444, 127
  %v458 = vpop.permute.xlu0 %457
  %459 = vrot.lane.b32.xlu0 %v445, 127
  %v460 = vpop.permute.xlu0 %459
  %461 = vrot.lane.b32.xlu0 %v446, 127
  %v462 = vpop.permute.xlu0 %461
  %463 = vrot.lane.b32.xlu0 %v447, 127
  %v464 = vpop.permute.xlu0 %463
  %v469 = vadd.f32 %v398, %v458
  %v470 = vadd.f32 %v399, %v460
  %v471 = vadd.f32 %v400, %v462
  %v472 = vadd.f32 %v401, %v464
  %477 = vrot.lane.b32.xlu0 %v449, 127
  %v478 = vpop.permute.xlu0 %477
  %479 = vrot.lane.b32.xlu0 %v450, 127
  %v480 = vpop.permute.xlu0 %479
  %481 = vrot.lane.b32.xlu0 %v451, 127
  %v482 = vpop.permute.xlu0 %481
  %483 = vrot.lane.b32.xlu0 %v452, 127
  %v484 = vpop.permute.xlu0 %483
  %v489 = vadd.f32 %v403, %v478
  %v490 = vadd.f32 %v404, %v480
  %v491 = vadd.f32 %v405, %v482
  %v492 = vadd.f32 %v406, %v484
  %v493 = vrot.slane %v311, 4
  %v494 = vmin.f32 %v311, %v493
  %v495 = vrot.slane %v494, 2
  %v496 = vmin.f32 %v494, %v495
  %v497 = vrot.slane %v496, 1
  %v498 = vmin.f32 %v496, %v497
  %s499 = vtos %v498
  %v500 = vrot.slane %v347, 4
  %v501 = vmax.f32 %v347, %v500
  %v502 = vrot.slane %v501, 2
  %v503 = vmax.f32 %v501, %v502
  %v504 = vrot.slane %v503, 1
  %v505 = vmax.f32 %v503, %v504
  %s506 = vtos %v505
  %s507 = ssub.f32 %s506, %s499
  %p508 = scmp.lt.f32.partialorder %s507, 1e-08
  %s509 = sadd.f32 %s507, 1e-08
  %v510 = vstv %s509
  %v511 = vrcp.pop %v510
  %v512 = vmul.f32 %v510, %v511
  %v513 = vsub.f32 1.0, %v512
  %v514 = vmul.f32 %v511, %v513
  %v515 = vadd.f32 %v511, %v514
  %vm516 = vweird.f32 %v510
  %vm517 = vweird.f32 %v511
  %vm518 = vmor %vm516, %vm517
  %v519 = vsel %vm518, %v511, %v515
  %v520 = vand.u32 2147483647, %v510
  %vm521 = vcmp.eq.f32.partialorder %v520, 8.507059e+37
  %v522 = vand.u32 %v510, 2147483648
  %v523 = vor.u32 1.1754944e-38, %v522
  %v524 = vsel %vm521, %v523, %v519
  %s525 = vtos %v524
  %s526 = scalar_select %p508, 0.0, %s525
  %s527 = ssub.f32 0.0, %s499
  %s528 = smul.f32 %s527, %s526
  %v529 = vstv %s526
  %v530 = vmul.f32 %v529, %v393
  %v531 = vmul.f32 %v529, %v394
  %v532 = vmul.f32 %v529, %v395
  %v533 = vmul.f32 %v529, %v396
  %v534 = vstv %s528
  %v535 = vmul.f32 %v534, %v393
  %v536 = vmul.f32 %v534, %v394
  %v537 = vmul.f32 %v534, %v395
  %v538 = vmul.f32 %v534, %v396
  %543 = vrot.lane.b32.xlu0 %v530, 126
  %v544 = vpop.permute.xlu0 %543
  %545 = vrot.lane.b32.xlu0 %v531, 126
  %v546 = vpop.permute.xlu0 %545
  %547 = vrot.lane.b32.xlu0 %v532, 126
  %v548 = vpop.permute.xlu0 %547
  %549 = vrot.lane.b32.xlu0 %v533, 126
  %v550 = vpop.permute.xlu0 %549
  %v555 = vadd.f32 %v469, %v544
  %v556 = vadd.f32 %v470, %v546
  %v557 = vadd.f32 %v471, %v548
  %v558 = vadd.f32 %v472, %v550
  %563 = vrot.lane.b32.xlu0 %v535, 126
  %v564 = vpop.permute.xlu0 %563
  %565 = vrot.lane.b32.xlu0 %v536, 126
  %v566 = vpop.permute.xlu0 %565
  %567 = vrot.lane.b32.xlu0 %v537, 126
  %v568 = vpop.permute.xlu0 %567
  %569 = vrot.lane.b32.xlu0 %v538, 126
  %v570 = vpop.permute.xlu0 %569
  %v575 = vadd.f32 %v489, %v564
  %v576 = vadd.f32 %v490, %v566
  %v577 = vadd.f32 %v491, %v568
  %v578 = vadd.f32 %v492, %v570
  %v579 = vrot.slane %v320, 4
  %v580 = vmin.f32 %v320, %v579
  %v581 = vrot.slane %v580, 2
  %v582 = vmin.f32 %v580, %v581
  %v583 = vrot.slane %v582, 1
  %v584 = vmin.f32 %v582, %v583
  %s585 = vtos %v584
  %v586 = vrot.slane %v356, 4
  %v587 = vmax.f32 %v356, %v586
  %v588 = vrot.slane %v587, 2
  %v589 = vmax.f32 %v587, %v588
  %v590 = vrot.slane %v589, 1
  %v591 = vmax.f32 %v589, %v590
  %s592 = vtos %v591
  %s593 = ssub.f32 %s592, %s585
  %p594 = scmp.lt.f32.partialorder %s593, 1e-08
  %s595 = sadd.f32 %s593, 1e-08
  %v596 = vstv %s595
  %v597 = vrcp.pop %v596
  %v598 = vmul.f32 %v596, %v597
  %v599 = vsub.f32 1.0, %v598
  %v600 = vmul.f32 %v597, %v599
  %v601 = vadd.f32 %v597, %v600
  %vm602 = vweird.f32 %v596
  %vm603 = vweird.f32 %v597
  %vm604 = vmor %vm602, %vm603
  %v605 = vsel %vm604, %v597, %v601
  %v606 = vand.u32 2147483647, %v596
  %vm607 = vcmp.eq.f32.partialorder %v606, 8.507059e+37
  %v608 = vand.u32 %v596, 2147483648
  %v609 = vor.u32 1.1754944e-38, %v608
  %v610 = vsel %vm607, %v609, %v605
  %s611 = vtos %v610
  %s612 = scalar_select %p594, 0.0, %s611
  %s613 = ssub.f32 0.0, %s585
  %s614 = smul.f32 %s613, %s612
  %v615 = vstv %s612
  %v616 = vmul.f32 %v615, %v393
  %v617 = vmul.f32 %v615, %v394
  %v618 = vmul.f32 %v615, %v395
  %v619 = vmul.f32 %v615, %v396
  %v620 = vstv %s614
  %v621 = vmul.f32 %v620, %v393
  %v622 = vmul.f32 %v620, %v394
  %v623 = vmul.f32 %v620, %v395
  %v624 = vmul.f32 %v620, %v396
  %629 = vrot.lane.b32.xlu0 %v616, 125
  %v630 = vpop.permute.xlu0 %629
  %631 = vrot.lane.b32.xlu0 %v617, 125
  %v632 = vpop.permute.xlu0 %631
  %633 = vrot.lane.b32.xlu0 %v618, 125
  %v634 = vpop.permute.xlu0 %633
  %635 = vrot.lane.b32.xlu0 %v619, 125
  %v636 = vpop.permute.xlu0 %635
  %v641 = vadd.f32 %v555, %v630
  %v642 = vadd.f32 %v556, %v632
  %v643 = vadd.f32 %v557, %v634
  %v644 = vadd.f32 %v558, %v636
  %649 = vrot.lane.b32.xlu0 %v621, 125
  %v650 = vpop.permute.xlu0 %649
  %651 = vrot.lane.b32.xlu0 %v622, 125
  %v652 = vpop.permute.xlu0 %651
  %653 = vrot.lane.b32.xlu0 %v623, 125
  %v654 = vpop.permute.xlu0 %653
  %655 = vrot.lane.b32.xlu0 %v624, 125
  %v656 = vpop.permute.xlu0 %655
  %v661 = vadd.f32 %v575, %v650
  %v662 = vadd.f32 %v576, %v652
  %v663 = vadd.f32 %v577, %v654
  %v664 = vadd.f32 %v578, %v656
  %666 = vset.pattern.permute.xlu0 0
  %667 = vperm.xlu0 %666, %v641
  %v668 = vpop.permute.xlu0 %667
  %671 = vset.pattern.permute.xlu0 0
  %672 = vperm.xlu0 %671, %v642
  %v673 = vpop.permute.xlu0 %672
  %676 = vset.pattern.permute.xlu0 0
  %677 = vperm.xlu0 %676, %v643
  %v678 = vpop.permute.xlu0 %677
  %681 = vset.pattern.permute.xlu0 0
  %682 = vperm.xlu0 %681, %v644
  %v683 = vpop.permute.xlu0 %682
  %v685 = vmul.f32 %v71, %v668
  %v686 = vmul.f32 %v100, %v668
  %v687 = vmul.f32 %v129, %v668
  %v688 = vmul.f32 %v158, %v668
  %v689 = vmul.f32 %v187, %v668
  %v690 = vmul.f32 %v216, %v668
  %v691 = vmul.f32 %v245, %v668
  %v692 = vmul.f32 %v274, %v668
  %v693 = vmul.f32 %v74, %v673
  %v694 = vmul.f32 %v103, %v673
  %v695 = vmul.f32 %v132, %v673
  %v696 = vmul.f32 %v161, %v673
  %v697 = vmul.f32 %v190, %v673
  %v698 = vmul.f32 %v219, %v673
  %v699 = vmul.f32 %v248, %v673
  %v700 = vmul.f32 %v277, %v673
  %v701 = vmul.f32 %v77, %v678
  %v702 = vmul.f32 %v106, %v678
  %v703 = vmul.f32 %v135, %v678
  %v704 = vmul.f32 %v164, %v678
  %v705 = vmul.f32 %v193, %v678
  %v706 = vmul.f32 %v222, %v678
  %v707 = vmul.f32 %v251, %v678
  %v708 = vmul.f32 %v280, %v678
  %v709 = vmul.f32 %v80, %v683
  %v710 = vmul.f32 %v109, %v683
  %v711 = vmul.f32 %v138, %v683
  %v712 = vmul.f32 %v167, %v683
  %v713 = vmul.f32 %v196, %v683
  %v714 = vmul.f32 %v225, %v683
  %v715 = vmul.f32 %v254, %v683
  %v716 = vmul.f32 %v283, %v683
  %718 = vset.pattern.permute.xlu0 0
  %719 = vperm.xlu0 %718, %v661
  %v720 = vpop.permute.xlu0 %719
  %723 = vset.pattern.permute.xlu0 0
  %724 = vperm.xlu0 %723, %v662
  %v725 = vpop.permute.xlu0 %724
  %728 = vset.pattern.permute.xlu0 0
  %729 = vperm.xlu0 %728, %v663
  %v730 = vpop.permute.xlu0 %729
  %733 = vset.pattern.permute.xlu0 0
  %734 = vperm.xlu0 %733, %v664
  %v735 = vpop.permute.xlu0 %734
  %v737 = vadd.f32 %v685, %v720
  %v738 = vadd.f32 %v686, %v720
  %v739 = vadd.f32 %v687, %v720
  %v740 = vadd.f32 %v688, %v720
  %v741 = vadd.f32 %v689, %v720
  %v742 = vadd.f32 %v690, %v720
  %v743 = vadd.f32 %v691, %v720
  %v744 = vadd.f32 %v692, %v720
  %v745 = vadd.f32 %v693, %v725
  %v746 = vadd.f32 %v694, %v725
  %v747 = vadd.f32 %v695, %v725
  %v748 = vadd.f32 %v696, %v725
  %v749 = vadd.f32 %v697, %v725
  %v750 = vadd.f32 %v698, %v725
  %v751 = vadd.f32 %v699, %v725
  %v752 = vadd.f32 %v700, %v725
  %v753 = vadd.f32 %v701, %v730
  %v754 = vadd.f32 %v702, %v730
  %v755 = vadd.f32 %v703, %v730
  %v756 = vadd.f32 %v704, %v730
  %v757 = vadd.f32 %v705, %v730
  %v758 = vadd.f32 %v706, %v730
  %v759 = vadd.f32 %v707, %v730
  %v760 = vadd.f32 %v708, %v730
  %v761 = vadd.f32 %v709, %v735
  %v762 = vadd.f32 %v710, %v735
  %v763 = vadd.f32 %v711, %v735
  %v764 = vadd.f32 %v712, %v735
  %v765 = vadd.f32 %v713, %v735
  %v766 = vadd.f32 %v714, %v735
  %v767 = vadd.f32 %v715, %v735
  %v768 = vadd.f32 %v716, %v735
  %v769 = vld [vmem:[%s3] sm:$0x3]
  %vm770 = vcmask 261120
  %v772 = vsel %vm770, %v769, 0
  %774 = vmatpush.msra.mxu0 0.0
  %775 = vmatpush.msra.mxu0 0.0
  %776 = vmatpush.msra.mxu0 0.0
  %777 = vmatpush.msra.mxu0 0.0
  %778 = vmatpush.msra.mxu0 0.0
  %779 = vmatpush.msra.mxu0 0.0
  %780 = vmatpush.msra.mxu0 0.0
  %781 = vmatpush.msra.mxu0 0.0
  %782 = vmatpush.msra.mxu0 0.0
  %783 = vmatpush.msra.mxu0 0.0
  %784 = vmatpush.msra.mxu0 0.0
  %785 = vmatpush.msra.mxu0 0.0
  %786 = vmatpush.msra.mxu0 %v761
  %787 = vmatpush.msra.mxu0 %v753
  %788 = vmatpush.msra.mxu0 %v745
  %789 = vmatpush.msra.mxu0 %v737
  %790 = vmatmul.f32.gmra.mxu0 %v772
  %v791 = vpop.f32.mrf.mxu0
  %v792 = vadd.f32 0.0, %v791
  %793 = vdwg.mxu0
  %794 = vmatpush.msra.mxu0 0.0
  %795 = vmatpush.msra.mxu0 0.0
  %796 = vmatpush.msra.mxu0 0.0
  %797 = vmatpush.msra.mxu0 0.0
  %798 = vmatpush.msra.mxu0 0.0
  %799 = vmatpush.msra.mxu0 0.0
  %800 = vmatpush.msra.mxu0 0.0
  %801 = vmatpush.msra.mxu0 0.0
  %802 = vmatpush.msra.mxu0 0.0
  %803 = vmatpush.msra.mxu0 0.0
  %804 = vmatpush.msra.mxu0 0.0
  %805 = vmatpush.msra.mxu0 0.0
  %806 = vmatpush.msra.mxu0 %v762
  %807 = vmatpush.msra.mxu0 %v754
  %808 = vmatpush.msra.mxu0 %v746
  %809 = vmatpush.msra.mxu0 %v738
  %810 = vmatmul.f32.gmra.mxu0 %v772
  %v811 = vpop.f32.mrf.mxu0
  %v812 = vadd.f32 0.0, %v811
  %813 = vdwg.mxu0
  %814 = vmatpush.msra.mxu0 0.0
  %815 = vmatpush.msra.mxu0 0.0
  %816 = vmatpush.msra.mxu0 0.0
  %817 = vmatpush.msra.mxu0 0.0
  %818 = vmatpush.msra.mxu0 0.0
  %819 = vmatpush.msra.mxu0 0.0
  %820 = vmatpush.msra.mxu0 0.0
  %821 = vmatpush.msra.mxu0 0.0
  %822 = vmatpush.msra.mxu0 0.0
  %823 = vmatpush.msra.mxu0 0.0
  %824 = vmatpush.msra.mxu0 0.0
  %825 = vmatpush.msra.mxu0 0.0
  %826 = vmatpush.msra.mxu0 %v763
  %827 = vmatpush.msra.mxu0 %v755
  %828 = vmatpush.msra.mxu0 %v747
  %829 = vmatpush.msra.mxu0 %v739
  %830 = vmatmul.f32.gmra.mxu0 %v772
  %v831 = vpop.f32.mrf.mxu0
  %v832 = vadd.f32 0.0, %v831
  %833 = vdwg.mxu0
  %834 = vmatpush.msra.mxu0 0.0
  %835 = vmatpush.msra.mxu0 0.0
  %836 = vmatpush.msra.mxu0 0.0
  %837 = vmatpush.msra.mxu0 0.0
  %838 = vmatpush.msra.mxu0 0.0
  %839 = vmatpush.msra.mxu0 0.0
  %840 = vmatpush.msra.mxu0 0.0
  %841 = vmatpush.msra.mxu0 0.0
  %842 = vmatpush.msra.mxu0 0.0
  %843 = vmatpush.msra.mxu0 0.0
  %844 = vmatpush.msra.mxu0 0.0
  %845 = vmatpush.msra.mxu0 0.0
  %846 = vmatpush.msra.mxu0 %v764
  %847 = vmatpush.msra.mxu0 %v756
  %848 = vmatpush.msra.mxu0 %v748
  %849 = vmatpush.msra.mxu0 %v740
  %850 = vmatmul.f32.gmra.mxu0 %v772
  %v851 = vpop.f32.mrf.mxu0
  %v852 = vadd.f32 0.0, %v851
  %853 = vdwg.mxu0
  %854 = vmatpush.msra.mxu0 0.0
  %855 = vmatpush.msra.mxu0 0.0
  %856 = vmatpush.msra.mxu0 0.0
  %857 = vmatpush.msra.mxu0 0.0
  %858 = vmatpush.msra.mxu0 0.0
  %859 = vmatpush.msra.mxu0 0.0
  %860 = vmatpush.msra.mxu0 0.0
  %861 = vmatpush.msra.mxu0 0.0
  %862 = vmatpush.msra.mxu0 0.0
  %863 = vmatpush.msra.mxu0 0.0
  %864 = vmatpush.msra.mxu0 0.0
  %865 = vmatpush.msra.mxu0 0.0
  %866 = vmatpush.msra.mxu0 %v765
  %867 = vmatpush.msra.mxu0 %v757
  %868 = vmatpush.msra.mxu0 %v749
  %869 = vmatpush.msra.mxu0 %v741
  %870 = vmatmul.f32.gmra.mxu0 %v772
  %v871 = vpop.f32.mrf.mxu0
  %v872 = vadd.f32 0.0, %v871
  %873 = vdwg.mxu0
  %874 = vmatpush.msra.mxu0 0.0
  %875 = vmatpush.msra.mxu0 0.0
  %876 = vmatpush.msra.mxu0 0.0
  %877 = vmatpush.msra.mxu0 0.0
  %878 = vmatpush.msra.mxu0 0.0
  %879 = vmatpush.msra.mxu0 0.0
  %880 = vmatpush.msra.mxu0 0.0
  %881 = vmatpush.msra.mxu0 0.0
  %882 = vmatpush.msra.mxu0 0.0
  %883 = vmatpush.msra.mxu0 0.0
  %884 = vmatpush.msra.mxu0 0.0
  %885 = vmatpush.msra.mxu0 0.0
  %886 = vmatpush.msra.mxu0 %v766
  %887 = vmatpush.msra.mxu0 %v758
  %888 = vmatpush.msra.mxu0 %v750
  %889 = vmatpush.msra.mxu0 %v742
  %890 = vmatmul.f32.gmra.mxu0 %v772
  %v891 = vpop.f32.mrf.mxu0
  %v892 = vadd.f32 0.0, %v891
  %893 = vdwg.mxu0
  %894 = vmatpush.msra.mxu0 0.0
  %895 = vmatpush.msra.mxu0 0.0
  %896 = vmatpush.msra.mxu0 0.0
  %897 = vmatpush.msra.mxu0 0.0
  %898 = vmatpush.msra.mxu0 0.0
  %899 = vmatpush.msra.mxu0 0.0
  %900 = vmatpush.msra.mxu0 0.0
  %901 = vmatpush.msra.mxu0 0.0
  %902 = vmatpush.msra.mxu0 0.0
  %903 = vmatpush.msra.mxu0 0.0
  %904 = vmatpush.msra.mxu0 0.0
  %905 = vmatpush.msra.mxu0 0.0
  %906 = vmatpush.msra.mxu0 %v767
  %907 = vmatpush.msra.mxu0 %v759
  %908 = vmatpush.msra.mxu0 %v751
  %909 = vmatpush.msra.mxu0 %v743
  %910 = vmatmul.f32.gmra.mxu0 %v772
  %v911 = vpop.f32.mrf.mxu0
  %v912 = vadd.f32 0.0, %v911
  %913 = vdwg.mxu0
  %914 = vmatpush.msra.mxu0 0.0
  %915 = vmatpush.msra.mxu0 0.0
  %916 = vmatpush.msra.mxu0 0.0
  %917 = vmatpush.msra.mxu0 0.0
  %918 = vmatpush.msra.mxu0 0.0
  %919 = vmatpush.msra.mxu0 0.0
  %920 = vmatpush.msra.mxu0 0.0
  %921 = vmatpush.msra.mxu0 0.0
  %922 = vmatpush.msra.mxu0 0.0
  %923 = vmatpush.msra.mxu0 0.0
  %924 = vmatpush.msra.mxu0 0.0
  %925 = vmatpush.msra.mxu0 0.0
  %926 = vmatpush.msra.mxu0 %v768
  %927 = vmatpush.msra.mxu0 %v760
  %928 = vmatpush.msra.mxu0 %v752
  %929 = vmatpush.msra.mxu0 %v744
  %930 = vmatmul.f32.gmra.mxu0 %v772
  %v931 = vpop.f32.mrf.mxu0
  %v932 = vadd.f32 0.0, %v931
  %933 = vdwg.mxu0
  %v934 = vld [vmem:[%s4] sm:$0xff]
  %v936 = vperm.slane %v934, 0
  %v937 = vperm.slane %v934, 1
  %v938 = vperm.slane %v934, 2
  %v939 = vperm.slane %v934, 3
  %v940 = vperm.slane %v934, 4
  %v941 = vperm.slane %v934, 5
  %v942 = vperm.slane %v934, 6
  %v943 = vperm.slane %v934, 7
  %v952 = vmul.f32 %v792, %v936
  %v953 = vmul.f32 %v812, %v937
  %v954 = vmul.f32 %v832, %v938
  %v955 = vmul.f32 %v852, %v939
  %v956 = vmul.f32 %v872, %v940
  %v957 = vmul.f32 %v892, %v941
  %v958 = vmul.f32 %v912, %v942
  %v959 = vmul.f32 %v932, %v943
  %vm960 = vcmask 1041408
  %v961 = vsel %vm960, %v952, inf
  %v962 = vsel %vm960, %v953, inf
  %v963 = vsel %vm960, %v954, inf
  %v964 = vsel %vm960, %v955, inf
  %v965 = vsel %vm960, %v956, inf
  %v966 = vmin.f32 %v961, %v965
  %v967 = vsel %vm960, %v957, inf
  %v968 = vmin.f32 %v962, %v967
  %v969 = vsel %vm960, %v958, inf
  %v970 = vmin.f32 %v963, %v969
  %v971 = vsel %vm960, %v959, inf
  %v972 = vmin.f32 %v964, %v971
  %v973 = vmin.f32 %v966, %v968
  %v974 = vmin.f32 %v970, %v972
  %v975 = vmin.f32 %v973, %v974
  %976 = vmin.xlane.f32.xlu0 %v975
  %v977 = vpop.xlane.xlu0 %976
  %v978 = vrot.slane %v977, 4
  %v979 = vmin.f32 %v977, %v978
  %v980 = vrot.slane %v979, 2
  %v981 = vmin.f32 %v979, %v980
  %v982 = vrot.slane %v981, 1
  %v983 = vmin.f32 %v981, %v982
  %s984 = vtos %v983
  %v985 = vstv %s984
  %v986 = vsub.f32 %v952, %v985
  %v987 = vsub.f32 %v953, %v985
  %v988 = vsub.f32 %v954, %v985
  %v989 = vsub.f32 %v955, %v985
  %v990 = vsub.f32 %v956, %v985
  %v991 = vsub.f32 %v957, %v985
  %v992 = vsub.f32 %v958, %v985
  %v993 = vsub.f32 %v959, %v985
  %v994 = vsel %vm960, %v986, -inf
  %v995 = vsel %vm960, %v987, -inf
  %v996 = vsel %vm960, %v988, -inf
  %v997 = vsel %vm960, %v989, -inf
  %v998 = vsel %vm960, %v990, -inf
  %v999 = vmax.f32 %v994, %v998
  %v1000 = vsel %vm960, %v991, -inf
  %v1001 = vmax.f32 %v995, %v1000
  %v1002 = vsel %vm960, %v992, -inf
  %v1003 = vmax.f32 %v996, %v1002
  %v1004 = vsel %vm960, %v993, -inf
  %v1005 = vmax.f32 %v997, %v1004
  %v1006 = vmax.f32 %v999, %v1001
  %v1007 = vmax.f32 %v1003, %v1005
  %v1008 = vmax.f32 %v1006, %v1007
  %1009 = vmax.xlane.f32.xlu0 %v1008
  %v1010 = vpop.xlane.xlu0 %1009
  %v1011 = vrot.slane %v1010, 4
  %v1012 = vmax.f32 %v1010, %v1011
  %v1013 = vrot.slane %v1012, 2
  %v1014 = vmax.f32 %v1012, %v1013
  %v1015 = vrot.slane %v1014, 1
  %v1016 = vmax.f32 %v1014, %v1015
  %s1017 = vtos %v1016
  %s1018 = sadd.f32 %s1017, 1e-06
  %v1019 = vstv %s1018
  %v1020 = vrcp.pop %v1019
  %v1021 = vmul.f32 %v1019, %v1020
  %v1022 = vsub.f32 1.0, %v1021
  %v1023 = vmul.f32 %v1020, %v1022
  %v1024 = vadd.f32 %v1020, %v1023
  %vm1025 = vweird.f32 %v1019
  %vm1026 = vweird.f32 %v1020
  %vm1027 = vmor %vm1025, %vm1026
  %v1028 = vsel %vm1027, %v1020, %v1024
  %v1029 = vand.u32 2147483647, %v1019
  %vm1030 = vcmp.eq.f32.partialorder %v1029, 8.507059e+37
  %v1031 = vand.u32 %v1019, 2147483648
  %v1032 = vor.u32 1.1754944e-38, %v1031
  %v1033 = vsel %vm1030, %v1032, %v1028
  %s1034 = vtos %v1033
  %v1035 = vstv %s1034
  %v1036 = vmul.f32 %v986, %v1035
  %v1037 = vmul.f32 %v987, %v1035
  %v1038 = vmul.f32 %v988, %v1035
  %v1039 = vmul.f32 %v989, %v1035
  %v1040 = vmul.f32 %v990, %v1035
  %v1041 = vmul.f32 %v991, %v1035
  %v1042 = vmul.f32 %v992, %v1035
  %v1043 = vmul.f32 %v993, %v1035
  %v1052 = vrot.slane %v1037, 6
  %v1053 = vrot.slane %v1038, 4
  %v1054 = vrot.slane %v1039, 2
  %v1055 = vrot.slane %v1041, 6
  %v1056 = vrot.slane %v1042, 4
  %v1057 = vrot.slane %v1043, 2
  %v1058 = vsel %vm960, %v1036, %v1052
  %vm1059 = vcmask 1045508
  %v1060 = vsel %vm1059, %v1053, %v1054
  %vm1061 = vcmask 1043456
  %v1062 = vsel %vm1061, %v1058, %v1060
  %v1063 = vsel %vm960, %v1040, %v1055
  %v1064 = vsel %vm1059, %v1056, %v1057
  %v1065 = vsel %vm1061, %v1063, %v1064
  %1068 = vst [vmem:[%s5] sm:$0xff] %v1062
  %1069 = vst [vmem:[%s5 + $0x8] sm:$0xff] %v1065
  // Predicated region
  $region22: #{encode_seg.1} parent=0 // pred_check
    _
  $region23: #{encode_seg.1} parent=0 // pred_check_branch
    %1071 = sbr.rel (0) target = $region25
  $region24: #{encode_seg.1} parent=0 // pred_region
    _
  $region25: #{encode_seg.1} parent=0 // pred_fallthru
    _
  // Predicated region
  $region26: #{encode_seg.1} parent=0 // pred_check
    _
  $region27: #{encode_seg.1} parent=0 // pred_check_branch
    %1073 = sbr.rel (0) target = $region29
  $region28: #{encode_seg.1} parent=0 // pred_region
    _
  $region29: #{encode_seg.1} parent=0 // pred_fallthru
    _

</llo_original>
